<compile_context>
chip_gen: v6e
topology: v6e:2x2x1
jax: 0.10.0
libtpu: 0.0.40
codegen_flags: <defaults>
</compile_context>

<pallas_src>
import functools

import jax
import jax.numpy as jnp
from jax.experimental import pallas as pl
from jax.experimental.pallas import tpu as pltpu

_LANE = 128
_MAX_TILE_B = 2048
_NEG_BIG = jnp.float32(-3e38)   # padded-class bias (never wins argmax)


def _round_up(n, m):
    return ((n + m - 1) // m) * m


def _choose_tile_b(batch):
    """Pick a lane-dense (multiple-of-128) batch tile.

    Targets >= 2 grid steps (even count) whenever the batch allows it, so both
    v7x TensorCores get balanced work, while keeping tiles big enough (up to
    2048 rows) to amortize per-grid-step overhead and fill the MXU M dim.
    """
    b128 = _round_up(batch, _LANE)
    if b128 <= _LANE:
        return _LANE                                 # tiny batch: one tile
    n = max(2, pl.cdiv(b128, _MAX_TILE_B))
    if n % 2:
        n += 1                                       # even tile count for v7x
    tile_b = _round_up(pl.cdiv(b128, n), _LANE)
    return min(max(tile_b, _LANE), _MAX_TILE_B)


def _mlp_argmax_kernel(num_layers, *refs):
    """Fused MLP forward + argmax for one batch tile.

    refs = (x_ref, w0_ref, b0_ref, ..., w_last_ref, b_last_ref, out_ref)
      x_ref      : (TILE_B, D_in)        caller dtype (streamed tile)
      w_i (i<L-1): (D_i_pad, D_{i+1}_pad) bf16  (zero-padded, VMEM-resident)
      b_i (i<L-1): (1, D_{i+1}_pad)       f32   (padded lanes exactly 0)
      w_last     : (C_pad, D_{L-1}_pad)   bf16  (pre-transposed)
      b_last     : (C_pad, 1)             f32   (padded rows = -3e38)
      out_ref    : (1, TILE_B)            int32 (lane-dense predictions)
    """
    x_ref = refs[0]
    param_refs = refs[1:1 + 2 * num_layers]
    out_ref = refs[1 + 2 * num_layers]

    # In-kernel bf16 repack of the streamed tile (free VPU op; avoids a
    # wrapper-side HBM rewrite of x).
    h = x_ref[...].astype(jnp.bfloat16)

    for i in range(num_layers - 1):
        w = param_refs[2 * i][...]                   # bf16
        b = param_refs[2 * i + 1][...]               # f32
        acc = jnp.dot(h, w, preferred_element_type=jnp.float32) + b
        h = jnp.maximum(acc, 0.0).astype(jnp.bfloat16)

    # Final layer: weight stored transposed -> MXU emits logits already as
    # (C_pad, TILE_B); no f32 logits transpose through the XLU.
    w_t = param_refs[2 * (num_layers - 1)][...]      # (C_pad, K_pad) bf16
    b_t = param_refs[2 * (num_layers - 1) + 1][...]  # (C_pad, 1) f32
    logits_t = jax.lax.dot_general(
        w_t, h,
        dimension_numbers=(((1,), (1,)), ((), ())),
        preferred_element_type=jnp.float32) + b_t    # (C_pad, TILE_B) f32

    # First-occurrence argmax over classes (== torch.argmax(logits, dim=1)).
    # Padded class rows carry a -3e38 bias so no extra masking pass is needed.
    max_val = jnp.max(logits_t, axis=0, keepdims=True)            # (1, TILE_B)
    cls = jax.lax.broadcasted_iota(jnp.int32, logits_t.shape, 0)
    big = jnp.iinfo(jnp.int32).max
    pred = jnp.min(jnp.where(logits_t == max_val, cls, big),
                   axis=0, keepdims=True)                          # (1, TILE_B)
    out_ref[...] = pred.astype(jnp.int32)


def mlp_classifier_forward(x, weights, biases, *, tile_b=None):
    """x: (B, D_in); weights[i]: (D_i, D_{i+1}); biases[i]: (D_{i+1},).

    Returns (B,) int32 predicted classes, matching torch.argmax(logits, dim=1).
    """
    num_layers = len(weights)
    batch, d_in = x.shape

    if tile_b is None:
        tile_b = _choose_tile_b(batch)
    num_tiles = pl.cdiv(batch, tile_b)
    b_pad = num_tiles * tile_b

    # Single dtype-preserving pad (only if the tile doesn't divide the batch);
    # no bf16 repack of the big streamed tensor here.
    x_p = x if b_pad == batch else jnp.pad(x, ((0, b_pad - batch), (0, 0)))

    args = [x_p]
    in_specs = [pl.BlockSpec((tile_b, d_in), lambda i: (i, 0))]
    in_dim = d_in
    for li, (w, b) in enumerate(zip(weights, biases)):
        k, out_dim = w.shape
        out_pad = _round_up(out_dim, _LANE)
        if li == num_layers - 1:
            # Final layer: pre-transposed weight, huge-negative padded bias.
            w_p = jnp.zeros((out_pad, in_dim), jnp.bfloat16)
            w_p = w_p.at[:out_dim, :k].set(w.T.astype(jnp.bfloat16))
            b_p = jnp.full((out_pad, 1), _NEG_BIG, jnp.float32)
            b_p = b_p.at[:out_dim, 0].set(b.astype(jnp.float32))
            in_specs.append(pl.BlockSpec((out_pad, in_dim), lambda i: (0, 0)))
            in_specs.append(pl.BlockSpec((out_pad, 1), lambda i: (0, 0)))
        else:
            # Intermediate layers: padded weight cols / bias lanes stay exact 0
            # so padded hidden units remain zero through ReLU.
            w_p = jnp.zeros((in_dim, out_pad), jnp.bfloat16)
            w_p = w_p.at[:k, :out_dim].set(w.astype(jnp.bfloat16))
            b_p = jnp.zeros((1, out_pad), jnp.float32)
            b_p = b_p.at[0, :out_dim].set(b.astype(jnp.float32))
            in_specs.append(pl.BlockSpec((in_dim, out_pad), lambda i: (0, 0)))
            in_specs.append(pl.BlockSpec((1, out_pad), lambda i: (0, 0)))
        args += [w_p, b_p]
        in_dim = out_pad

    kernel = functools.partial(_mlp_argmax_kernel, num_layers)
    out = pl.pallas_call(
        kernel,
        out_shape=jax.ShapeDtypeStruct((1, b_pad), jnp.int32),
        grid_spec=pltpu.PrefetchScalarGridSpec(
            num_scalar_prefetch=0,
            grid=(num_tiles,),
            in_specs=in_specs,
            out_specs=pl.BlockSpec((1, tile_b), lambda i: (0, i)),
        ),
        compiler_params=pltpu.CompilerParams(
            dimension_semantics=("parallel",),      # v7x: batch tiles over both TCs
            vmem_limit_bytes=48 * 1024 * 1024,      # > v5e's 16 MiB default, < v7x's 64 MiB
        ),
    )(*args)
    return out[0, :batch]


def _reference_forward(x, weights, biases):
    # Mirrors the kernel's math path (bf16 MXU operands, f32 accumulation,
    # transposed final matmul) so the argmax comparison is exact.
    h = x.astype(jnp.bfloat16)
    for w, b in zip(weights[:-1], biases[:-1]):
        a = jnp.dot(h, w.astype(jnp.bfloat16),
                    preferred_element_type=jnp.float32) + b.astype(jnp.float32)
        h = jnp.maximum(a, 0.0).astype(jnp.bfloat16)
    w_t = weights[-1].T.astype(jnp.bfloat16)
    logits_t = jax.lax.dot_general(
        w_t, h, dimension_numbers=(((1,), (1,)), ((), ())),
        preferred_element_type=jnp.float32)
    logits_t = logits_t + biases[-1].astype(jnp.float32)[:, None]
    return jnp.argmax(logits_t, axis=0).astype(jnp.int32)


if __name__ == "__main__":
    key = jax.random.PRNGKey(0)

    batch, input_dim, num_classes = 300, 32, 10
    hidden_dims = [64, 32]
    dims = [input_dim] + hidden_dims + [num_classes]

    keys = jax.random.split(key, 1 + 2 * (len(dims) - 1))
    x = jax.random.normal(keys[0], (batch, input_dim), dtype=jnp.float32)

    # Deterministic synthetic params (uniform(-1/sqrt(fan_in), 1/sqrt(fan_in)),
    # matching nn.Linear's init scale).
    weights, biases = [], []
    for i in range(len(dims) - 1):
        bound = 1.0 / (dims[i] ** 0.5)
        w = jax.random.uniform(keys[1 + 2 * i], (dims[i], dims[i + 1]),
                               minval=-bound, maxval=bound, dtype=jnp.float32)
        b = jax.random.uniform(keys[2 + 2 * i], (dims[i + 1],),
                               minval=-bound, maxval=bound, dtype=jnp.float32)
        weights.append(w)
        biases.append(b)

    # Auto tile: 300 rows -> tile_b=256, 2 grid steps (even, so both v7x TCs
    # get a tile); exercises the ragged-tail batch padding path too.
    pred = mlp_classifier_forward(x, weights, biases)
    jax.block_until_ready(pred)

    ref = _reference_forward(x, weights, biases)
    assert pred.shape == (batch,)
    assert bool(jnp.all(pred == ref))

    print("KERNEL_OK")
</pallas_src>

<mosaic_0001>
module attributes {stable_mosaic.version = 11 : i64} {
  func.func @_mlp_argmax_kernel(%arg0: i32, %arg1: memref<256x32xf32, #tpu.memory_space<vmem>>, %arg2: memref<32x128xbf16, #tpu.memory_space<vmem>>, %arg3: memref<1x128xf32, #tpu.memory_space<vmem>>, %arg4: memref<128x128xbf16, #tpu.memory_space<vmem>>, %arg5: memref<1x128xf32, #tpu.memory_space<vmem>>, %arg6: memref<128x128xbf16, #tpu.memory_space<vmem>>, %arg7: memref<128x1xf32, #tpu.memory_space<vmem>>, %arg8: memref<1x256xi32, #tpu.memory_space<vmem>>) attributes {dimension_semantics = [#tpu.dimension_semantics<parallel>], iteration_bounds = array<i64: 2>, scalar_prefetch = 0 : i64, scratch_operands = 0 : i64, tpu.core_type = #tpu.core_type<tc>, window_params = [{transform_indices = @transform_0, window_bounds = array<i64: 256, 32>}, {pipeline_mode = #tpu.pipeline_mode<synchronous>, transform_indices = @transform_1, window_bounds = array<i64: 32, 128>}, {pipeline_mode = #tpu.pipeline_mode<synchronous>, transform_indices = @transform_2, window_bounds = array<i64: 1, 128>}, {pipeline_mode = #tpu.pipeline_mode<synchronous>, transform_indices = @transform_3, window_bounds = array<i64: 128, 128>}, {pipeline_mode = #tpu.pipeline_mode<synchronous>, transform_indices = @transform_4, window_bounds = array<i64: 1, 128>}, {pipeline_mode = #tpu.pipeline_mode<synchronous>, transform_indices = @transform_5, window_bounds = array<i64: 128, 128>}, {pipeline_mode = #tpu.pipeline_mode<synchronous>, transform_indices = @transform_6, window_bounds = array<i64: 128, 1>}, {transform_indices = @transform_7, window_bounds = array<i64: 1, 256>}]} {
    %c0 = arith.constant 0 : index
    %c0_0 = arith.constant 0 : index
    %0 = vector.load %arg1[%c0, %c0_0] : memref<256x32xf32, #tpu.memory_space<vmem>>, vector<256x32xf32>
    %1 = arith.truncf %0 : vector<256x32xf32> to vector<256x32xbf16>
    %c0_1 = arith.constant 0 : index
    %c0_2 = arith.constant 0 : index
    %2 = vector.load %arg2[%c0_1, %c0_2] : memref<32x128xbf16, #tpu.memory_space<vmem>>, vector<32x128xbf16>
    %c0_3 = arith.constant 0 : index
    %c0_4 = arith.constant 0 : index
    %3 = vector.load %arg3[%c0_3, %c0_4] : memref<1x128xf32, #tpu.memory_space<vmem>>, vector<1x128xf32>
    %cst = arith.constant dense<0.000000e+00> : vector<256x128xf32>
    %4 = tpu.matmul %1, %2, %cst {dimension_numbers = #tpu.dot_dimension_numbers<[1], [0], [0], [1], [0, 0, 1, 1], [], []>} : vector<256x32xbf16>, vector<32x128xbf16>, vector<256x128xf32> -> vector<256x128xf32>
    %5 = vector.broadcast %3 : vector<1x128xf32> to vector<256x128xf32>
    %6 = arith.addf %4, %5 : vector<256x128xf32>
    %cst_5 = arith.constant 0.000000e+00 : f32
    %7 = vector.broadcast %cst_5 : f32 to vector<256x128xf32>
    %8 = arith.maximumf %6, %7 : vector<256x128xf32>
    %9 = arith.truncf %8 : vector<256x128xf32> to vector<256x128xbf16>
    %c0_6 = arith.constant 0 : index
    %c0_7 = arith.constant 0 : index
    %10 = vector.load %arg4[%c0_6, %c0_7] : memref<128x128xbf16, #tpu.memory_space<vmem>>, vector<128x128xbf16>
    %c0_8 = arith.constant 0 : index
    %c0_9 = arith.constant 0 : index
    %11 = vector.load %arg5[%c0_8, %c0_9] : memref<1x128xf32, #tpu.memory_space<vmem>>, vector<1x128xf32>
    %cst_10 = arith.constant dense<0.000000e+00> : vector<256x128xf32>
    %12 = tpu.matmul %9, %10, %cst_10 {dimension_numbers = #tpu.dot_dimension_numbers<[1], [0], [0], [1], [0, 0, 1, 1], [], []>} : vector<256x128xbf16>, vector<128x128xbf16>, vector<256x128xf32> -> vector<256x128xf32>
    %13 = vector.broadcast %11 : vector<1x128xf32> to vector<256x128xf32>
    %14 = arith.addf %12, %13 : vector<256x128xf32>
    %cst_11 = arith.constant 0.000000e+00 : f32
    %15 = vector.broadcast %cst_11 : f32 to vector<256x128xf32>
    %16 = arith.maximumf %14, %15 : vector<256x128xf32>
    %17 = arith.truncf %16 : vector<256x128xf32> to vector<256x128xbf16>
    %c0_12 = arith.constant 0 : index
    %c0_13 = arith.constant 0 : index
    %18 = vector.load %arg6[%c0_12, %c0_13] : memref<128x128xbf16, #tpu.memory_space<vmem>>, vector<128x128xbf16>
    %c0_14 = arith.constant 0 : index
    %c0_15 = arith.constant 0 : index
    %19 = vector.load %arg7[%c0_14, %c0_15] : memref<128x1xf32, #tpu.memory_space<vmem>>, vector<128x1xf32>
    %cst_16 = arith.constant dense<0.000000e+00> : vector<128x256xf32>
    %20 = tpu.matmul %18, %17, %cst_16 {dimension_numbers = #tpu.dot_dimension_numbers<[1], [1], [0], [0], [0, 0, 1, 0], [], []>} : vector<128x128xbf16>, vector<256x128xbf16>, vector<128x256xf32> -> vector<128x256xf32>
    %21 = vector.broadcast %19 : vector<128x1xf32> to vector<128x256xf32>
    %22 = arith.addf %20, %21 : vector<128x256xf32>
    %cst_17 = arith.constant dense<0xFF800000> : vector<256xf32>
    %23 = vector.multi_reduction <maximumf>, %22, %cst_17 [0] : vector<128x256xf32> to vector<256xf32>
    %24 = vector.shape_cast %23 : vector<256xf32> to vector<1x256xf32>
    %25 = tpu.iota {dimensions = array<i32: 0>} : vector<128x256xi32>
    %26 = vector.broadcast %24 : vector<1x256xf32> to vector<128x256xf32>
    %27 = arith.cmpf oeq, %22, %26 : vector<128x256xf32>
    %c2147483647_i32 = arith.constant 2147483647 : i32
    %28 = vector.broadcast %c2147483647_i32 : i32 to vector<128x256xi32>
    %29 = arith.select %27, %25, %28 : vector<128x256xi1>, vector<128x256xi32>
    %cst_18 = arith.constant dense<2147483647> : vector<256xi32>
    %30 = vector.multi_reduction <minsi>, %29, %cst_18 [0] : vector<128x256xi32> to vector<256xi32>
    %31 = vector.shape_cast %30 : vector<256xi32> to vector<1x256xi32>
    %c0_19 = arith.constant 0 : index
    %c0_20 = arith.constant 0 : index
    %32 = vector.load %arg8[%c0_19, %c0_20] : memref<1x256xi32, #tpu.memory_space<vmem>>, vector<1x256xi32>
    tpu.vector_store %arg8[%c0_19, %c0_20], %31 {strides = array<i32>} : memref<1x256xi32, #tpu.memory_space<vmem>>, vector<1x256xi32>,
    return
  }
  func.func @transform_0(%arg0: i32) -> (i32, i32) {
    %c0_i32 = arith.constant 0 : i32
    %c0_i32_0 = arith.constant 0 : i32
    return %arg0, %c0_i32 : i32, i32
  }
  func.func @transform_1(%arg0: i32) -> (i32, i32) {
    %c0_i32 = arith.constant 0 : i32
    %c0_i32_0 = arith.constant 0 : i32
    %c0_i32_1 = arith.constant 0 : i32
    return %c0_i32, %c0_i32_0 : i32, i32
  }
  func.func @transform_2(%arg0: i32) -> (i32, i32) {
    %c0_i32 = arith.constant 0 : i32
    %c0_i32_0 = arith.constant 0 : i32
    %c0_i32_1 = arith.constant 0 : i32
    return %c0_i32, %c0_i32_0 : i32, i32
  }
  func.func @transform_3(%arg0: i32) -> (i32, i32) {
    %c0_i32 = arith.constant 0 : i32
    %c0_i32_0 = arith.constant 0 : i32
    %c0_i32_1 = arith.constant 0 : i32
    return %c0_i32, %c0_i32_0 : i32, i32
  }
  func.func @transform_4(%arg0: i32) -> (i32, i32) {
    %c0_i32 = arith.constant 0 : i32
    %c0_i32_0 = arith.constant 0 : i32
    %c0_i32_1 = arith.constant 0 : i32
    return %c0_i32, %c0_i32_0 : i32, i32
  }
  func.func @transform_5(%arg0: i32) -> (i32, i32) {
    %c0_i32 = arith.constant 0 : i32
    %c0_i32_0 = arith.constant 0 : i32
    %c0_i32_1 = arith.constant 0 : i32
    return %c0_i32, %c0_i32_0 : i32, i32
  }
  func.func @transform_6(%arg0: i32) -> (i32, i32) {
    %c0_i32 = arith.constant 0 : i32
    %c0_i32_0 = arith.constant 0 : i32
    %c0_i32_1 = arith.constant 0 : i32
    return %c0_i32, %c0_i32_0 : i32, i32
  }
  func.func @transform_7(%arg0: i32) -> (i32, i32) {
    %c0_i32 = arith.constant 0 : i32
    %c0_i32_0 = arith.constant 0 : i32
    return %c0_i32, %arg0 : i32, i32
  }
}

</mosaic_0001>

<llo_original>
// kernel: tpu_custom_call.1
$region0: #{tpu_custom_call.1}
  #allocation0 [shape = 'u32[]', space=smem, size = 0x4, offset = 0x4, fixed_abs, tag = 'smem constant byte address 0x4 - core index']
  #allocation1 [shape = 'u32[144,128]{1,0:T(1,128)}', space=vmem, size = 0x12000, scoped, tag = 'internal scratch']
  %s0 = inlined_call_operand.vmem [shape: f32[512,32], index: 0, kind: input, shape index: {}]
  %s1 = inlined_call_operand.vmem [shape: bf16[32,128], index: 1, kind: input, shape index: {}]
  %s2 = inlined_call_operand.vmem [shape: f32[1,128], index: 2, kind: input, shape index: {}]
  %s3 = inlined_call_operand.vmem [shape: bf16[128,128], index: 3, kind: input, shape index: {}]
  %s4 = inlined_call_operand.vmem [shape: f32[1,128], index: 4, kind: input, shape index: {}]
  %s5 = inlined_call_operand.vmem [shape: bf16[128,128], index: 5, kind: input, shape index: {}]
  %s6 = inlined_call_operand.vmem [shape: f32[128,1], index: 6, kind: input, shape index: {}]
  %s7 = inlined_call_operand.hbm [shape: s32[1,512], index: 7, kind: output, shape index: {}]
  %s8 = sld [smem:[#allocation0]]
  $region61: #{tpu_custom_call.1} parent=0
    _
  %s10 = ssub.s32 1, %s8
  %s11 = scalar_select 0, %s10, %s8
  $region1: #{tpu_custom_call.1} parent=0
    #allocation2 [shape = 'u8[2048]{0}', space=vmem, size = 0x800, scoped, tag = 'output window, operand 0']
    #allocation3 [shape = 's32[2]{0}', space=sflag, size = 0x8, scoped, tag = 'scoped memory for tpu_custom_call.1']
    %12 = vsyncpa [#allocation3], 0
    %s13 = scalar_lea.sflag [#allocation3], 1
    %14 = vsyncpa %s13, 0
    loop: start=0, step=1, limit=4
    $region2: #{tpu_custom_call.1} parent=1 // loop_pre_header
      _
    $region3: #{tpu_custom_call.1} parent=1 // loop_header
      %s16 = sphi 0, %s20
      %p17 = scmp.ge.s32.totalorder %s16, 4
      %s26 = sphi 0, %s28
      %s29 = sphi 0, %s26
      %s30 = sphi 0, %s29
      %s46 = sphi 0, %s30
      %s50 = sphi 0, %s50
      %s52 = sphi 0, %s50
      %s53 = sphi 0, %s52
      %s67 = sphi 0, %s53
      %s71 = sphi 0, %s71
      %s73 = sphi 0, %s71
      %s74 = sphi 0, %s73
      %s88 = sphi 0, %s74
      %s92 = sphi 0, %s92
      %s94 = sphi 0, %s92
      %s95 = sphi 0, %s94
      %s109 = sphi 0, %s95
      %s113 = sphi 0, %s113
      %s115 = sphi 0, %s113
      %s116 = sphi 0, %s115
      %s130 = sphi 0, %s116
      %s134 = sphi 0, %s134
      %s136 = sphi 0, %s134
      %s137 = sphi 0, %s136
      %s151 = sphi 0, %s137
      %s155 = sphi 0, %s155
      %s157 = sphi 0, %s155
      %s158 = sphi 0, %s157
      %s172 = sphi 0, %s158
      %s178 = sphi 0, %s180
      %s181 = sphi 0, %s178
      %s182 = sphi 0, %s181
      %s198 = sphi 0, %s182
    $region4: #{tpu_custom_call.1} parent=1 // loop_header_branch
      %19 = sbr.rel (%p17) target = $region8
    $region5: #{tpu_custom_call.1} parent=1 // loop_body
      %s21 = ssub.s32 %s16, 1
      %s22 = ssub.s32 %s16, 2
      %s23 = sadd.s32 %s16, 1
      %s24 = ssub.s32 %s16, %s23
      %p25 = scmp.eq.s32.totalorder %s24, 0
      %s27 = sadd.s32 %s26, 1
      %s28 = scalar_select %p25, %s26, %s27
      %p31 = pneg %p25
      %p32 = scmp.eq.s32.totalorder %s16, 1
      %p33 = por %p31, %p32
      %p34 = scmp.ne.s32.totalorder %s26, %s29
      %p35 = scmp.eq.s32.totalorder %s16, 0
      %p36 = por %p34, %p35
      %p37 = scmp.ne.s32.totalorder %s26, %s29
      %p38 = scmp.eq.s32.totalorder %s21, 1
      %p39 = por %p37, %p38
      %p40 = scmp.ne.s32.totalorder %s29, %s30
      %p41 = scmp.eq.s32.totalorder %s21, 0
      %p42 = por %p40, %p41
      %p43 = scmp.ne.s32.totalorder %s29, %s30
      %p44 = scmp.eq.s32.totalorder %s22, 1
      %p45 = por %p43, %p44
      %p47 = scmp.ne.s32.totalorder %s30, %s46
      %p48 = scmp.eq.s32.totalorder %s22, 0
      %p49 = por %p47, %p48
      %s51 = sadd.s32 %s50, 1
      %p54 = scmp.eq.s32.totalorder %s16, 1
      %p55 = scmp.ne.s32.totalorder %s50, %s52
      %p56 = scmp.eq.s32.totalorder %s16, 0
      %p57 = por %p55, %p56
      %p58 = scmp.ne.s32.totalorder %s50, %s52
      %p59 = scmp.eq.s32.totalorder %s21, 1
      %p60 = por %p58, %p59
      %p61 = scmp.ne.s32.totalorder %s52, %s53
      %p62 = scmp.eq.s32.totalorder %s21, 0
      %p63 = por %p61, %p62
      %p64 = scmp.ne.s32.totalorder %s52, %s53
      %p65 = scmp.eq.s32.totalorder %s22, 1
      %p66 = por %p64, %p65
      %p68 = scmp.ne.s32.totalorder %s53, %s67
      %p69 = scmp.eq.s32.totalorder %s22, 0
      %p70 = por %p68, %p69
      %s72 = sadd.s32 %s71, 1
      %p75 = scmp.eq.s32.totalorder %s16, 1
      %p76 = scmp.ne.s32.totalorder %s71, %s73
      %p77 = scmp.eq.s32.totalorder %s16, 0
      %p78 = por %p76, %p77
      %p79 = scmp.ne.s32.totalorder %s71, %s73
      %p80 = scmp.eq.s32.totalorder %s21, 1
      %p81 = por %p79, %p80
      %p82 = scmp.ne.s32.totalorder %s73, %s74
      %p83 = scmp.eq.s32.totalorder %s21, 0
      %p84 = por %p82, %p83
      %p85 = scmp.ne.s32.totalorder %s73, %s74
      %p86 = scmp.eq.s32.totalorder %s22, 1
      %p87 = por %p85, %p86
      %p89 = scmp.ne.s32.totalorder %s74, %s88
      %p90 = scmp.eq.s32.totalorder %s22, 0
      %p91 = por %p89, %p90
      %s93 = sadd.s32 %s92, 1
      %p96 = scmp.eq.s32.totalorder %s16, 1
      %p97 = scmp.ne.s32.totalorder %s92, %s94
      %p98 = scmp.eq.s32.totalorder %s16, 0
      %p99 = por %p97, %p98
      %p100 = scmp.ne.s32.totalorder %s92, %s94
      %p101 = scmp.eq.s32.totalorder %s21, 1
      %p102 = por %p100, %p101
      %p103 = scmp.ne.s32.totalorder %s94, %s95
      %p104 = scmp.eq.s32.totalorder %s21, 0
      %p105 = por %p103, %p104
      %p106 = scmp.ne.s32.totalorder %s94, %s95
      %p107 = scmp.eq.s32.totalorder %s22, 1
      %p108 = por %p106, %p107
      %p110 = scmp.ne.s32.totalorder %s95, %s109
      %p111 = scmp.eq.s32.totalorder %s22, 0
      %p112 = por %p110, %p111
      %s114 = sadd.s32 %s113, 1
      %p117 = scmp.eq.s32.totalorder %s16, 1
      %p118 = scmp.ne.s32.totalorder %s113, %s115
      %p119 = scmp.eq.s32.totalorder %s16, 0
      %p120 = por %p118, %p119
      %p121 = scmp.ne.s32.totalorder %s113, %s115
      %p122 = scmp.eq.s32.totalorder %s21, 1
      %p123 = por %p121, %p122
      %p124 = scmp.ne.s32.totalorder %s115, %s116
      %p125 = scmp.eq.s32.totalorder %s21, 0
      %p126 = por %p124, %p125
      %p127 = scmp.ne.s32.totalorder %s115, %s116
      %p128 = scmp.eq.s32.totalorder %s22, 1
      %p129 = por %p127, %p128
      %p131 = scmp.ne.s32.totalorder %s116, %s130
      %p132 = scmp.eq.s32.totalorder %s22, 0
      %p133 = por %p131, %p132
      %s135 = sadd.s32 %s134, 1
      %p138 = scmp.eq.s32.totalorder %s16, 1
      %p139 = scmp.ne.s32.totalorder %s134, %s136
      %p140 = scmp.eq.s32.totalorder %s16, 0
      %p141 = por %p139, %p140
      %p142 = scmp.ne.s32.totalorder %s134, %s136
      %p143 = scmp.eq.s32.totalorder %s21, 1
      %p144 = por %p142, %p143
      %p145 = scmp.ne.s32.totalorder %s136, %s137
      %p146 = scmp.eq.s32.totalorder %s21, 0
      %p147 = por %p145, %p146
      %p148 = scmp.ne.s32.totalorder %s136, %s137
      %p149 = scmp.eq.s32.totalorder %s22, 1
      %p150 = por %p148, %p149
      %p152 = scmp.ne.s32.totalorder %s137, %s151
      %p153 = scmp.eq.s32.totalorder %s22, 0
      %p154 = por %p152, %p153
      %s156 = sadd.s32 %s155, 1
      %p159 = scmp.eq.s32.totalorder %s16, 1
      %p160 = scmp.ne.s32.totalorder %s155, %s157
      %p161 = scmp.eq.s32.totalorder %s16, 0
      %p162 = por %p160, %p161
      %p163 = scmp.ne.s32.totalorder %s155, %s157
      %p164 = scmp.eq.s32.totalorder %s21, 1
      %p165 = por %p163, %p164
      %p166 = scmp.ne.s32.totalorder %s157, %s158
      %p167 = scmp.eq.s32.totalorder %s21, 0
      %p168 = por %p166, %p167
      %p169 = scmp.ne.s32.totalorder %s157, %s158
      %p170 = scmp.eq.s32.totalorder %s22, 1
      %p171 = por %p169, %p170
      %p173 = scmp.ne.s32.totalorder %s158, %s172
      %p174 = scmp.eq.s32.totalorder %s22, 0
      %p175 = por %p173, %p174
      %s176 = ssub.s32 %s16, %s23
      %p177 = scmp.eq.s32.totalorder %s176, 0
      %s179 = sadd.s32 %s178, 1
      %s180 = scalar_select %p177, %s178, %s179
      %p183 = pneg %p177
      %p184 = scmp.eq.s32.totalorder %s16, 1
      %p185 = por %p183, %p184
      %p186 = scmp.ne.s32.totalorder %s178, %s181
      %p187 = scmp.eq.s32.totalorder %s16, 0
      %p188 = por %p186, %p187
      %p189 = scmp.ne.s32.totalorder %s178, %s181
      %p190 = scmp.eq.s32.totalorder %s21, 1
      %p191 = por %p189, %p190
      %p192 = scmp.ne.s32.totalorder %s181, %s182
      %p193 = scmp.eq.s32.totalorder %s21, 0
      %p194 = por %p192, %p193
      %p195 = scmp.ne.s32.totalorder %s181, %s182
      %p196 = scmp.eq.s32.totalorder %s22, 1
      %p197 = por %p195, %p196
      %p199 = scmp.ne.s32.totalorder %s182, %s198
      %p200 = scmp.eq.s32.totalorder %s22, 0
      %p201 = por %p199, %p200
      %p202 = scmp.le.s32.totalorder 1, %s16
      %p203 = scmp.lt.s32.totalorder %s16, 3
      %p204 = pnand %p202, %p203
      %p205 = pneg %p204
      // Predicated region
      $region9: #{tpu_custom_call.1} parent=5 // pred_check
        _
      $region10: #{tpu_custom_call.1} parent=5 // pred_check_branch
        %207 = sbr.rel (%p204) target = $region12
      $region11: #{tpu_custom_call.1} parent=5 // pred_region
        %s208 = ssub.s32 %s16, 1
        // Predicated region
        $region13: #{tpu_custom_call.1} parent=11 // pred_check
          %p209 = pneg %p63
        $region14: #{tpu_custom_call.1} parent=11 // pred_check_branch
          %211 = sbr.rel (%p209) target = $region16
        $region15: #{tpu_custom_call.1} parent=11 // pred_region
          _
        $region16: #{tpu_custom_call.1} parent=11 // pred_fallthru
          _
        // Predicated region
        $region17: #{tpu_custom_call.1} parent=11 // pred_check
          %p212 = pneg %p84
        $region18: #{tpu_custom_call.1} parent=11 // pred_check_branch
          %214 = sbr.rel (%p212) target = $region20
        $region19: #{tpu_custom_call.1} parent=11 // pred_region
          _
        $region20: #{tpu_custom_call.1} parent=11 // pred_fallthru
          _
        // Predicated region
        $region21: #{tpu_custom_call.1} parent=11 // pred_check
          %p215 = pneg %p105
        $region22: #{tpu_custom_call.1} parent=11 // pred_check_branch
          %217 = sbr.rel (%p215) target = $region24
        $region23: #{tpu_custom_call.1} parent=11 // pred_region
          _
        $region24: #{tpu_custom_call.1} parent=11 // pred_fallthru
          _
        // Predicated region
        $region25: #{tpu_custom_call.1} parent=11 // pred_check
          %p218 = pneg %p126
        $region26: #{tpu_custom_call.1} parent=11 // pred_check_branch
          %220 = sbr.rel (%p218) target = $region28
        $region27: #{tpu_custom_call.1} parent=11 // pred_region
          _
        $region28: #{tpu_custom_call.1} parent=11 // pred_fallthru
          _
        // Predicated region
        $region29: #{tpu_custom_call.1} parent=11 // pred_check
          %p221 = pneg %p147
        $region30: #{tpu_custom_call.1} parent=11 // pred_check_branch
          %223 = sbr.rel (%p221) target = $region32
        $region31: #{tpu_custom_call.1} parent=11 // pred_region
          _
        $region32: #{tpu_custom_call.1} parent=11 // pred_fallthru
          _
        // Predicated region
        $region33: #{tpu_custom_call.1} parent=11 // pred_check
          %p224 = pneg %p168
        $region34: #{tpu_custom_call.1} parent=11 // pred_check_branch
          %226 = sbr.rel (%p224) target = $region36
        $region35: #{tpu_custom_call.1} parent=11 // pred_region
          _
        $region36: #{tpu_custom_call.1} parent=11 // pred_fallthru
          _
      $region12: #{tpu_custom_call.1} parent=5 // pred_fallthru
        _
      %p227 = scmp.lt.s32.totalorder %s16, 2
      // Predicated region
      $region37: #{tpu_custom_call.1} parent=5 // pred_check
        %p228 = pneg %p227
      $region38: #{tpu_custom_call.1} parent=5 // pred_check_branch
        %230 = sbr.rel (%p228) target = $region40
      $region39: #{tpu_custom_call.1} parent=5 // pred_region
        // Predicated region
        $region41: #{tpu_custom_call.1} parent=39 // pred_check
          %p231 = pneg %p36
        $region42: #{tpu_custom_call.1} parent=39 // pred_check_branch
          %233 = sbr.rel (%p231) target = $region44
        $region43: #{tpu_custom_call.1} parent=39 // pred_region
          %s234 = smul.u32 32, %s16
          %p235 = scmp.lt.s32.totalorder %s234, 63
          %s236 = scalar_select %p235, %s234, 63
          %s237 = smul.addr %s236, 8
          %s238 = scalar_lea.vmem %s0, %s237
          %s239 = smul.u32 32, %s16
        $region44: #{tpu_custom_call.1} parent=39 // pred_fallthru
          _
      $region40: #{tpu_custom_call.1} parent=5 // pred_fallthru
        _
      %p240 = scmp.le.s32.totalorder 1, %s16
      %p241 = scmp.lt.s32.totalorder %s16, 3
      %p242 = pnand %p240, %p241
      %p243 = pneg %p242
      // Predicated region
      $region45: #{tpu_custom_call.1} parent=5 // pred_check
        _
      $region46: #{tpu_custom_call.1} parent=5 // pred_check_branch
        %245 = sbr.rel (%p242) target = $region48
      $region47: #{tpu_custom_call.1} parent=5 // pred_region
        %s246 = ssub.s32 %s16, 1
        %s247 = smul.u32 32, %s21
        %p248 = scmp.lt.s32.totalorder %s247, 63
        %s249 = scalar_select %p248, %s247, 63
        %s250 = smul.addr %s249, 8
        %s251 = scalar_lea.vmem %s0, %s250
        %p252 = pneg %p42
        %p253 = pneg %p39
        %p254 = pneg %p63
        %p255 = pneg %p60
        %p256 = pneg %p84
        %p257 = pneg %p81
        %p258 = pneg %p105
        %p259 = pneg %p102
        %p260 = pneg %p126
        %p261 = pneg %p123
        %p262 = pneg %p147
        %p263 = pneg %p144
        %p264 = pneg %p168
        %p265 = pneg %p165
        %p266 = pneg %p194
        %p267 = pneg %p191
        %s268 = sand.u32 %s181, 1
        %s269 = scalar_lea.sflag [#allocation3], %s268
        %s270 = sand.u32 %s181, 1
        %s271 = smul.addr %s270, 2
        %s272 = scalar_lea.vmem [#allocation2], %s271
        %s273 = smul.u32 32, %s21
        %p274 = scmp.lt.s32.totalorder %s273, 63
        %s275 = scalar_select %p274, %s273, 63
        %s276 = smul.addr %s275, 8
        %s277 = scalar_lea.vmem %s0, %s276
        %s278 = smul.u32 32, %s21
        %s279 = smul.u32 2, %s21
        %v281 = vld [vmem:[%s277] sm:$0xff]
        %v282 = vld [vmem:[%s277 + $0x8] sm:$0xff]
        %v283 = vld [vmem:[%s277 + $0x10] sm:$0xff]
        %v284 = vld [vmem:[%s277 + $0x18] sm:$0xff]
        %v285 = vld [vmem:[%s277 + $0x20] sm:$0xff]
        %v286 = vld [vmem:[%s277 + $0x28] sm:$0xff]
        %v287 = vld [vmem:[%s277 + $0x30] sm:$0xff]
        %v288 = vld [vmem:[%s277 + $0x38] sm:$0xff]
        %v289 = vld [vmem:[%s277 + $0x40] sm:$0xff]
        %v290 = vld [vmem:[%s277 + $0x48] sm:$0xff]
        %v291 = vld [vmem:[%s277 + $0x50] sm:$0xff]
        %v292 = vld [vmem:[%s277 + $0x58] sm:$0xff]
        %v293 = vld [vmem:[%s277 + $0x60] sm:$0xff]
        %v294 = vld [vmem:[%s277 + $0x68] sm:$0xff]
        %v295 = vld [vmem:[%s277 + $0x70] sm:$0xff]
        %v296 = vld [vmem:[%s277 + $0x78] sm:$0xff]
        %v297 = vld [vmem:[%s277 + $0x80] sm:$0xff]
        %v298 = vld [vmem:[%s277 + $0x88] sm:$0xff]
        %v299 = vld [vmem:[%s277 + $0x90] sm:$0xff]
        %v300 = vld [vmem:[%s277 + $0x98] sm:$0xff]
        %v301 = vld [vmem:[%s277 + $0xa0] sm:$0xff]
        %v302 = vld [vmem:[%s277 + $0xa8] sm:$0xff]
        %v303 = vld [vmem:[%s277 + $0xb0] sm:$0xff]
        %v304 = vld [vmem:[%s277 + $0xb8] sm:$0xff]
        %v305 = vld [vmem:[%s277 + $0xc0] sm:$0xff]
        %v306 = vld [vmem:[%s277 + $0xc8] sm:$0xff]
        %v307 = vld [vmem:[%s277 + $0xd0] sm:$0xff]
        %v308 = vld [vmem:[%s277 + $0xd8] sm:$0xff]
        %v309 = vld [vmem:[%s277 + $0xe0] sm:$0xff]
        %v310 = vld [vmem:[%s277 + $0xe8] sm:$0xff]
        %v311 = vld [vmem:[%s277 + $0xf0] sm:$0xff]
        %v312 = vld [vmem:[%s277 + $0xf8] sm:$0xff]
        %v313 = vpack.c.bf16 %v282, %v281
        %v314 = vpack.c.bf16 %v284, %v283
        %v315 = vpack.c.bf16 %v286, %v285
        %v316 = vpack.c.bf16 %v288, %v287
        %v317 = vpack.c.bf16 %v290, %v289
        %v318 = vpack.c.bf16 %v292, %v291
        %v319 = vpack.c.bf16 %v294, %v293
        %v320 = vpack.c.bf16 %v296, %v295
        %v321 = vpack.c.bf16 %v298, %v297
        %v322 = vpack.c.bf16 %v300, %v299
        %v323 = vpack.c.bf16 %v302, %v301
        %v324 = vpack.c.bf16 %v304, %v303
        %v325 = vpack.c.bf16 %v306, %v305
        %v326 = vpack.c.bf16 %v308, %v307
        %v327 = vpack.c.bf16 %v310, %v309
        %v328 = vpack.c.bf16 %v312, %v311
        %v329 = vld [vmem:[%s1] sm:$0xf]
        %v330 = vld [vmem:[%s1 + $0x4] sm:$0xf]
        %v331 = vld [vmem:[%s1 + $0x8] sm:$0xf]
        %v332 = vld [vmem:[%s1 + $0xc] sm:$0xf]
        %v333 = vld [vmem:[%s2] sm:$0x1]
        %v335 = vlaneseq
        %v336 = vshrl.u32 %v335, 7
        %v337 = vsub.s32 0, %v336
        %v338 = vrot.slane %v333, %v337
        %v344 = vunpack.c.l.b16 %v329
        %v345 = vunpack.c.l.b16 %v330
        %v346 = vunpack.c.l.b16 %v331
        %v347 = vunpack.c.l.b16 %v332
        %v348 = vpack.c.b16 %v345, %v344
        %v349 = vpack.c.b16 %v347, %v346
        %vm352 = vcmask 261120
        %v354 = vsel %vm352, %v313, 0
        %v357 = vsel %vm352, %v314, 0
        %v360 = vsel %vm352, %v315, 0
        %v363 = vsel %vm352, %v316, 0
        %v366 = vsel %vm352, %v317, 0
        %v369 = vsel %vm352, %v318, 0
        %v372 = vsel %vm352, %v319, 0
        %v375 = vsel %vm352, %v320, 0
        %v378 = vsel %vm352, %v321, 0
        %v381 = vsel %vm352, %v322, 0
        %v384 = vsel %vm352, %v323, 0
        %v387 = vsel %vm352, %v324, 0
        %v390 = vsel %vm352, %v325, 0
        %v393 = vsel %vm352, %v326, 0
        %v396 = vsel %vm352, %v327, 0
        %v399 = vsel %vm352, %v328, 0
        %401 = vmatprep.subr.bf16.mxu0 0
        %402 = vmatpush1.bf16.msra.mxu0 0
        %403 = vmatprep.subr.bf16.mxu0 0
        %404 = vmatpush1.bf16.msra.mxu0 0
        %405 = vmatprep.subr.bf16.mxu0 0
        %406 = vmatpush1.bf16.msra.mxu0 0
        %407 = vmatprep.subr.bf16.mxu0 0
        %408 = vmatpush1.bf16.msra.mxu0 0
        %409 = vmatprep.subr.bf16.mxu0 0
        %410 = vmatpush1.bf16.msra.mxu0 0
        %411 = vmatprep.subr.bf16.mxu0 0
        %412 = vmatpush1.bf16.msra.mxu0 0
        %413 = vmatprep.subr.bf16.mxu0 0
        %414 = vmatpush1.bf16.msra.mxu0 %v349
        %415 = vmatprep.subr.bf16.mxu0 0
        %416 = vmatpush1.bf16.msra.mxu0 %v348
        %417 = vmatprep.subr.bf16.mxu0 0
        %418 = vmatpush2.bf16.msra.mxu0 0
        %419 = vmatprep.subr.bf16.mxu0 0
        %420 = vmatpush2.bf16.msra.mxu0 0
        %421 = vmatprep.subr.bf16.mxu0 0
        %422 = vmatpush2.bf16.msra.mxu0 0
        %423 = vmatprep.subr.bf16.mxu0 0
        %424 = vmatpush2.bf16.msra.mxu0 0
        %425 = vmatprep.subr.bf16.mxu0 0
        %426 = vmatpush2.bf16.msra.mxu0 0
        %427 = vmatprep.subr.bf16.mxu0 0
        %428 = vmatpush2.bf16.msra.mxu0 0
        %429 = vmatprep.subr.bf16.mxu0 0
        %430 = vmatpush2.bf16.msra.mxu0 0
        %431 = vmatprep.subr.bf16.mxu0 0
        %432 = vmatpush2.bf16.msra.mxu0 0
        %433 = vmatprep.mubr.bf16.mxu0 0
        %434 = vmatmul.mubr.bf16.gmra.mxu0 %v354
        %v435 = vpop.f32.mrf.mxu0
        %v436 = vadd.f32 %v338, %v435
        %v437 = vpop.f32.mrf.mxu0
        %v438 = vpop.f32.mrf.mxu0
        %v439 = vadd.f32 %v338, %v438
        %v440 = vpop.f32.mrf.mxu0
        %441 = vmatprep.mubr.bf16.mxu0 0
        %442 = vmatmul.mubr.bf16.gmra.mxu0 %v357
        %v443 = vpop.f32.mrf.mxu0
        %v444 = vadd.f32 %v338, %v443
        %v445 = vpop.f32.mrf.mxu0
        %v446 = vpop.f32.mrf.mxu0
        %v447 = vadd.f32 %v338, %v446
        %v448 = vpop.f32.mrf.mxu0
        %449 = vmatprep.mubr.bf16.mxu0 0
        %450 = vmatmul.mubr.bf16.gmra.mxu0 %v360
        %v451 = vpop.f32.mrf.mxu0
        %v452 = vadd.f32 %v338, %v451
        %v453 = vpop.f32.mrf.mxu0
        %v454 = vpop.f32.mrf.mxu0
        %v455 = vadd.f32 %v338, %v454
        %v456 = vpop.f32.mrf.mxu0
        %457 = vmatprep.mubr.bf16.mxu0 0
        %458 = vmatmul.mubr.bf16.gmra.mxu0 %v363
        %v459 = vpop.f32.mrf.mxu0
        %v460 = vadd.f32 %v338, %v459
        %v461 = vpop.f32.mrf.mxu0
        %v462 = vpop.f32.mrf.mxu0
        %v463 = vadd.f32 %v338, %v462
        %v464 = vpop.f32.mrf.mxu0
        %465 = vmatprep.mubr.bf16.mxu0 0
        %466 = vmatmul.mubr.bf16.gmra.mxu0 %v366
        %v467 = vpop.f32.mrf.mxu0
        %v468 = vadd.f32 %v338, %v467
        %v469 = vpop.f32.mrf.mxu0
        %v470 = vpop.f32.mrf.mxu0
        %v471 = vadd.f32 %v338, %v470
        %v472 = vpop.f32.mrf.mxu0
        %473 = vmatprep.mubr.bf16.mxu0 0
        %474 = vmatmul.mubr.bf16.gmra.mxu0 %v369
        %v475 = vpop.f32.mrf.mxu0
        %v476 = vadd.f32 %v338, %v475
        %v477 = vpop.f32.mrf.mxu0
        %v478 = vpop.f32.mrf.mxu0
        %v479 = vadd.f32 %v338, %v478
        %v480 = vpop.f32.mrf.mxu0
        %481 = vmatprep.mubr.bf16.mxu0 0
        %482 = vmatmul.mubr.bf16.gmra.mxu0 %v372
        %v483 = vpop.f32.mrf.mxu0
        %v484 = vadd.f32 %v338, %v483
        %v485 = vpop.f32.mrf.mxu0
        %v486 = vpop.f32.mrf.mxu0
        %v487 = vadd.f32 %v338, %v486
        %v488 = vpop.f32.mrf.mxu0
        %489 = vmatprep.mubr.bf16.mxu0 0
        %490 = vmatmul.mubr.bf16.gmra.mxu0 %v375
        %v491 = vpop.f32.mrf.mxu0
        %v492 = vadd.f32 %v338, %v491
        %v493 = vpop.f32.mrf.mxu0
        %v494 = vpop.f32.mrf.mxu0
        %v495 = vadd.f32 %v338, %v494
        %v496 = vpop.f32.mrf.mxu0
        %497 = vmatprep.mubr.bf16.mxu0 0
        %498 = vmatmul.mubr.bf16.gmra.mxu0 %v378
        %v499 = vpop.f32.mrf.mxu0
        %v500 = vadd.f32 %v338, %v499
        %v501 = vpop.f32.mrf.mxu0
        %v502 = vpop.f32.mrf.mxu0
        %v503 = vadd.f32 %v338, %v502
        %v504 = vpop.f32.mrf.mxu0
        %505 = vmatprep.mubr.bf16.mxu0 0
        %506 = vmatmul.mubr.bf16.gmra.mxu0 %v381
        %v507 = vpop.f32.mrf.mxu0
        %v508 = vadd.f32 %v338, %v507
        %v509 = vpop.f32.mrf.mxu0
        %v510 = vpop.f32.mrf.mxu0
        %v511 = vadd.f32 %v338, %v510
        %v512 = vpop.f32.mrf.mxu0
        %513 = vmatprep.mubr.bf16.mxu0 0
        %514 = vmatmul.mubr.bf16.gmra.mxu0 %v384
        %v515 = vpop.f32.mrf.mxu0
        %v516 = vadd.f32 %v338, %v515
        %v517 = vpop.f32.mrf.mxu0
        %v518 = vpop.f32.mrf.mxu0
        %v519 = vadd.f32 %v338, %v518
        %v520 = vpop.f32.mrf.mxu0
        %521 = vmatprep.mubr.bf16.mxu0 0
        %522 = vmatmul.mubr.bf16.gmra.mxu0 %v387
        %v523 = vpop.f32.mrf.mxu0
        %v524 = vadd.f32 %v338, %v523
        %v525 = vpop.f32.mrf.mxu0
        %v526 = vpop.f32.mrf.mxu0
        %v527 = vadd.f32 %v338, %v526
        %v528 = vpop.f32.mrf.mxu0
        %529 = vmatprep.mubr.bf16.mxu0 0
        %530 = vmatmul.mubr.bf16.gmra.mxu0 %v390
        %v531 = vpop.f32.mrf.mxu0
        %v532 = vadd.f32 %v338, %v531
        %v533 = vpop.f32.mrf.mxu0
        %v534 = vpop.f32.mrf.mxu0
        %v535 = vadd.f32 %v338, %v534
        %v536 = vpop.f32.mrf.mxu0
        %537 = vmatprep.mubr.bf16.mxu0 0
        %538 = vmatmul.mubr.bf16.gmra.mxu0 %v393
        %v539 = vpop.f32.mrf.mxu0
        %v540 = vadd.f32 %v338, %v539
        %v541 = vpop.f32.mrf.mxu0
        %v542 = vpop.f32.mrf.mxu0
        %v543 = vadd.f32 %v338, %v542
        %v544 = vpop.f32.mrf.mxu0
        %545 = vmatprep.mubr.bf16.mxu0 0
        %546 = vmatmul.mubr.bf16.gmra.mxu0 %v396
        %v547 = vpop.f32.mrf.mxu0
        %v548 = vadd.f32 %v338, %v547
        %v549 = vpop.f32.mrf.mxu0
        %v550 = vpop.f32.mrf.mxu0
        %v551 = vadd.f32 %v338, %v550
        %v552 = vpop.f32.mrf.mxu0
        %553 = vmatprep.mubr.bf16.mxu0 0
        %554 = vmatmul.mubr.bf16.gmra.mxu0 %v399
        %v555 = vpop.f32.mrf.mxu0
        %v556 = vadd.f32 %v338, %v555
        %v557 = vpop.f32.mrf.mxu0
        %v558 = vpop.f32.mrf.mxu0
        %v559 = vadd.f32 %v338, %v558
        %v560 = vpop.f32.mrf.mxu0
        %561 = vdwg.mxu0
        %v562 = vmax.f32 %v436, 0.0
        %v563 = vmax.f32 %v439, 0.0
        %v564 = vmax.f32 %v444, 0.0
        %v565 = vmax.f32 %v447, 0.0
        %v566 = vmax.f32 %v452, 0.0
        %v567 = vmax.f32 %v455, 0.0
        %v568 = vmax.f32 %v460, 0.0
        %v569 = vmax.f32 %v463, 0.0
        %v570 = vmax.f32 %v468, 0.0
        %v571 = vmax.f32 %v471, 0.0
        %v572 = vmax.f32 %v476, 0.0
        %v573 = vmax.f32 %v479, 0.0
        %v574 = vmax.f32 %v484, 0.0
        %v575 = vmax.f32 %v487, 0.0
        %v576 = vmax.f32 %v492, 0.0
        %v577 = vmax.f32 %v495, 0.0
        %v578 = vmax.f32 %v500, 0.0
        %v579 = vmax.f32 %v503, 0.0
        %v580 = vmax.f32 %v508, 0.0
        %v581 = vmax.f32 %v511, 0.0
        %v582 = vmax.f32 %v516, 0.0
        %v583 = vmax.f32 %v519, 0.0
        %v584 = vmax.f32 %v524, 0.0
        %v585 = vmax.f32 %v527, 0.0
        %v586 = vmax.f32 %v532, 0.0
        %v587 = vmax.f32 %v535, 0.0
        %v588 = vmax.f32 %v540, 0.0
        %v589 = vmax.f32 %v543, 0.0
        %v590 = vmax.f32 %v548, 0.0
        %v591 = vmax.f32 %v551, 0.0
        %v592 = vmax.f32 %v556, 0.0
        %v593 = vmax.f32 %v559, 0.0
        %v594 = vpack.c.bf16 %v563, %v562
        %v595 = vpack.c.bf16 %v565, %v564
        %v596 = vpack.c.bf16 %v567, %v566
        %v597 = vpack.c.bf16 %v569, %v568
        %v598 = vpack.c.bf16 %v571, %v570
        %v599 = vpack.c.bf16 %v573, %v572
        %v600 = vpack.c.bf16 %v575, %v574
        %v601 = vpack.c.bf16 %v577, %v576
        %v602 = vpack.c.bf16 %v579, %v578
        %v603 = vpack.c.bf16 %v581, %v580
        %v604 = vpack.c.bf16 %v583, %v582
        %v605 = vpack.c.bf16 %v585, %v584
        %v606 = vpack.c.bf16 %v587, %v586
        %v607 = vpack.c.bf16 %v589, %v588
        %v608 = vpack.c.bf16 %v591, %v590
        %v609 = vpack.c.bf16 %v593, %v592
        %v610 = vld [vmem:[%s3] sm:$0xf]
        %v611 = vld [vmem:[%s3 + $0x4] sm:$0xf]
        %v612 = vld [vmem:[%s3 + $0x8] sm:$0xf]
        %v613 = vld [vmem:[%s3 + $0xc] sm:$0xf]
        %v614 = vld [vmem:[%s3 + $0x10] sm:$0xf]
        %v615 = vld [vmem:[%s3 + $0x14] sm:$0xf]
        %v616 = vld [vmem:[%s3 + $0x18] sm:$0xf]
        %v617 = vld [vmem:[%s3 + $0x1c] sm:$0xf]
        %v618 = vld [vmem:[%s3 + $0x20] sm:$0xf]
        %v619 = vld [vmem:[%s3 + $0x24] sm:$0xf]
        %v620 = vld [vmem:[%s3 + $0x28] sm:$0xf]
        %v621 = vld [vmem:[%s3 + $0x2c] sm:$0xf]
        %v622 = vld [vmem:[%s3 + $0x30] sm:$0xf]
        %v623 = vld [vmem:[%s3 + $0x34] sm:$0xf]
        %v624 = vld [vmem:[%s3 + $0x38] sm:$0xf]
        %v625 = vld [vmem:[%s3 + $0x3c] sm:$0xf]
        %v626 = vld [vmem:[%s4] sm:$0x1]
        %v628 = vlaneseq
        %v629 = vshrl.u32 %v628, 7
        %v630 = vsub.s32 0, %v629
        %v631 = vrot.slane %v626, %v630
        %v649 = vunpack.c.l.b16 %v610
        %v650 = vunpack.c.l.b16 %v611
        %v651 = vunpack.c.l.b16 %v612
        %v652 = vunpack.c.l.b16 %v613
        %v653 = vunpack.c.l.b16 %v614
        %v654 = vunpack.c.l.b16 %v615
        %v655 = vunpack.c.l.b16 %v616
        %v656 = vunpack.c.l.b16 %v617
        %v657 = vunpack.c.l.b16 %v618
        %v658 = vunpack.c.l.b16 %v619
        %v659 = vunpack.c.l.b16 %v620
        %v660 = vunpack.c.l.b16 %v621
        %v661 = vunpack.c.l.b16 %v622
        %v662 = vunpack.c.l.b16 %v623
        %v663 = vunpack.c.l.b16 %v624
        %v664 = vunpack.c.l.b16 %v625
        %v665 = vpack.c.b16 %v650, %v649
        %v666 = vpack.c.b16 %v652, %v651
        %v667 = vpack.c.b16 %v654, %v653
        %v668 = vpack.c.b16 %v656, %v655
        %v669 = vpack.c.b16 %v658, %v657
        %v670 = vpack.c.b16 %v660, %v659
        %v671 = vpack.c.b16 %v662, %v661
        %v672 = vpack.c.b16 %v664, %v663
        %681 = vmatprep.subr.bf16.mxu0 0
        %682 = vmatpush1.bf16.msra.mxu0 %v672
        %683 = vmatprep.subr.bf16.mxu0 0
        %684 = vmatpush1.bf16.msra.mxu0 %v671
        %685 = vmatprep.subr.bf16.mxu0 0
        %686 = vmatpush1.bf16.msra.mxu0 %v670
        %687 = vmatprep.subr.bf16.mxu0 0
        %688 = vmatpush1.bf16.msra.mxu0 %v669
        %689 = vmatprep.subr.bf16.mxu0 0
        %690 = vmatpush1.bf16.msra.mxu0 %v668
        %691 = vmatprep.subr.bf16.mxu0 0
        %692 = vmatpush1.bf16.msra.mxu0 %v667
        %693 = vmatprep.subr.bf16.mxu0 0
        %694 = vmatpush1.bf16.msra.mxu0 %v666
        %695 = vmatprep.subr.bf16.mxu0 0
        %696 = vmatpush1.bf16.msra.mxu0 %v665
        %697 = vmatprep.subr.bf16.mxu0 0
        %698 = vmatpush2.bf16.msra.mxu0 0
        %699 = vmatprep.subr.bf16.mxu0 0
        %700 = vmatpush2.bf16.msra.mxu0 0
        %701 = vmatprep.subr.bf16.mxu0 0
        %702 = vmatpush2.bf16.msra.mxu0 0
        %703 = vmatprep.subr.bf16.mxu0 0
        %704 = vmatpush2.bf16.msra.mxu0 0
        %705 = vmatprep.subr.bf16.mxu0 0
        %706 = vmatpush2.bf16.msra.mxu0 0
        %707 = vmatprep.subr.bf16.mxu0 0
        %708 = vmatpush2.bf16.msra.mxu0 0
        %709 = vmatprep.subr.bf16.mxu0 0
        %710 = vmatpush2.bf16.msra.mxu0 0
        %711 = vmatprep.subr.bf16.mxu0 0
        %712 = vmatpush2.bf16.msra.mxu0 0
        %713 = vmatprep.mubr.bf16.mxu0 0
        %714 = vmatmul.mubr.bf16.gmra.mxu0 %v594
        %v715 = vpop.f32.mrf.mxu0
        %v716 = vadd.f32 %v631, %v715
        %v717 = vpop.f32.mrf.mxu0
        %v718 = vpop.f32.mrf.mxu0
        %v719 = vadd.f32 %v631, %v718
        %v720 = vpop.f32.mrf.mxu0
        %721 = vmatprep.mubr.bf16.mxu0 0
        %722 = vmatmul.mubr.bf16.gmra.mxu0 %v595
        %v723 = vpop.f32.mrf.mxu0
        %v724 = vadd.f32 %v631, %v723
        %v725 = vpop.f32.mrf.mxu0
        %v726 = vpop.f32.mrf.mxu0
        %v727 = vadd.f32 %v631, %v726
        %v728 = vpop.f32.mrf.mxu0
        %729 = vmatprep.mubr.bf16.mxu0 0
        %730 = vmatmul.mubr.bf16.gmra.mxu0 %v596
        %v731 = vpop.f32.mrf.mxu0
        %v732 = vadd.f32 %v631, %v731
        %v733 = vpop.f32.mrf.mxu0
        %v734 = vpop.f32.mrf.mxu0
        %v735 = vadd.f32 %v631, %v734
        %v736 = vpop.f32.mrf.mxu0
        %737 = vmatprep.mubr.bf16.mxu0 0
        %738 = vmatmul.mubr.bf16.gmra.mxu0 %v597
        %v739 = vpop.f32.mrf.mxu0
        %v740 = vadd.f32 %v631, %v739
        %v741 = vpop.f32.mrf.mxu0
        %v742 = vpop.f32.mrf.mxu0
        %v743 = vadd.f32 %v631, %v742
        %v744 = vpop.f32.mrf.mxu0
        %745 = vmatprep.mubr.bf16.mxu0 0
        %746 = vmatmul.mubr.bf16.gmra.mxu0 %v598
        %v747 = vpop.f32.mrf.mxu0
        %v748 = vadd.f32 %v631, %v747
        %v749 = vpop.f32.mrf.mxu0
        %v750 = vpop.f32.mrf.mxu0
        %v751 = vadd.f32 %v631, %v750
        %v752 = vpop.f32.mrf.mxu0
        %753 = vmatprep.mubr.bf16.mxu0 0
        %754 = vmatmul.mubr.bf16.gmra.mxu0 %v599
        %v755 = vpop.f32.mrf.mxu0
        %v756 = vadd.f32 %v631, %v755
        %v757 = vpop.f32.mrf.mxu0
        %v758 = vpop.f32.mrf.mxu0
        %v759 = vadd.f32 %v631, %v758
        %v760 = vpop.f32.mrf.mxu0
        %761 = vmatprep.mubr.bf16.mxu0 0
        %762 = vmatmul.mubr.bf16.gmra.mxu0 %v600
        %v763 = vpop.f32.mrf.mxu0
        %v764 = vadd.f32 %v631, %v763
        %v765 = vpop.f32.mrf.mxu0
        %v766 = vpop.f32.mrf.mxu0
        %v767 = vadd.f32 %v631, %v766
        %v768 = vpop.f32.mrf.mxu0
        %769 = vmatprep.mubr.bf16.mxu0 0
        %770 = vmatmul.mubr.bf16.gmra.mxu0 %v601
        %v771 = vpop.f32.mrf.mxu0
        %v772 = vadd.f32 %v631, %v771
        %v773 = vpop.f32.mrf.mxu0
        %v774 = vpop.f32.mrf.mxu0
        %v775 = vadd.f32 %v631, %v774
        %v776 = vpop.f32.mrf.mxu0
        %777 = vmatprep.mubr.bf16.mxu0 0
        %778 = vmatmul.mubr.bf16.gmra.mxu0 %v602
        %v779 = vpop.f32.mrf.mxu0
        %v780 = vadd.f32 %v631, %v779
        %v781 = vpop.f32.mrf.mxu0
        %v782 = vpop.f32.mrf.mxu0
        %v783 = vadd.f32 %v631, %v782
        %v784 = vpop.f32.mrf.mxu0
        %785 = vmatprep.mubr.bf16.mxu0 0
        %786 = vmatmul.mubr.bf16.gmra.mxu0 %v603
        %v787 = vpop.f32.mrf.mxu0
        %v788 = vadd.f32 %v631, %v787
        %v789 = vpop.f32.mrf.mxu0
        %v790 = vpop.f32.mrf.mxu0
        %v791 = vadd.f32 %v631, %v790
        %v792 = vpop.f32.mrf.mxu0
        %793 = vmatprep.mubr.bf16.mxu0 0
        %794 = vmatmul.mubr.bf16.gmra.mxu0 %v604
        %v795 = vpop.f32.mrf.mxu0
        %v796 = vadd.f32 %v631, %v795
        %v797 = vpop.f32.mrf.mxu0
        %v798 = vpop.f32.mrf.mxu0
        %v799 = vadd.f32 %v631, %v798
        %v800 = vpop.f32.mrf.mxu0
        %801 = vmatprep.mubr.bf16.mxu0 0
        %802 = vmatmul.mubr.bf16.gmra.mxu0 %v605
        %v803 = vpop.f32.mrf.mxu0
        %v804 = vadd.f32 %v631, %v803
        %v805 = vpop.f32.mrf.mxu0
        %v806 = vpop.f32.mrf.mxu0
        %v807 = vadd.f32 %v631, %v806
        %v808 = vpop.f32.mrf.mxu0
        %809 = vmatprep.mubr.bf16.mxu0 0
        %810 = vmatmul.mubr.bf16.gmra.mxu0 %v606
        %v811 = vpop.f32.mrf.mxu0
        %v812 = vadd.f32 %v631, %v811
        %v813 = vpop.f32.mrf.mxu0
        %v814 = vpop.f32.mrf.mxu0
        %v815 = vadd.f32 %v631, %v814
        %v816 = vpop.f32.mrf.mxu0
        %817 = vmatprep.mubr.bf16.mxu0 0
        %818 = vmatmul.mubr.bf16.gmra.mxu0 %v607
        %v819 = vpop.f32.mrf.mxu0
        %v820 = vadd.f32 %v631, %v819
        %v821 = vpop.f32.mrf.mxu0
        %v822 = vpop.f32.mrf.mxu0
        %v823 = vadd.f32 %v631, %v822
        %v824 = vpop.f32.mrf.mxu0
        %825 = vmatprep.mubr.bf16.mxu0 0
        %826 = vmatmul.mubr.bf16.gmra.mxu0 %v608
        %v827 = vpop.f32.mrf.mxu0
        %v828 = vadd.f32 %v631, %v827
        %v829 = vpop.f32.mrf.mxu0
        %v830 = vpop.f32.mrf.mxu0
        %v831 = vadd.f32 %v631, %v830
        %v832 = vpop.f32.mrf.mxu0
        %833 = vmatprep.mubr.bf16.mxu0 0
        %834 = vmatmul.mubr.bf16.gmra.mxu0 %v609
        %v835 = vpop.f32.mrf.mxu0
        %v836 = vadd.f32 %v631, %v835
        %v837 = vpop.f32.mrf.mxu0
        %v838 = vpop.f32.mrf.mxu0
        %v839 = vadd.f32 %v631, %v838
        %v840 = vpop.f32.mrf.mxu0
        %841 = vdwg.mxu0
        %v842 = vmax.f32 %v716, 0.0
        %v843 = vmax.f32 %v719, 0.0
        %v844 = vmax.f32 %v724, 0.0
        %v845 = vmax.f32 %v727, 0.0
        %v846 = vmax.f32 %v732, 0.0
        %v847 = vmax.f32 %v735, 0.0
        %v848 = vmax.f32 %v740, 0.0
        %v849 = vmax.f32 %v743, 0.0
        %v850 = vmax.f32 %v748, 0.0
        %v851 = vmax.f32 %v751, 0.0
        %v852 = vmax.f32 %v756, 0.0
        %v853 = vmax.f32 %v759, 0.0
        %v854 = vmax.f32 %v764, 0.0
        %v855 = vmax.f32 %v767, 0.0
        %v856 = vmax.f32 %v772, 0.0
        %v857 = vmax.f32 %v775, 0.0
        %v858 = vmax.f32 %v780, 0.0
        %v859 = vmax.f32 %v783, 0.0
        %v860 = vmax.f32 %v788, 0.0
        %v861 = vmax.f32 %v791, 0.0
        %v862 = vmax.f32 %v796, 0.0
        %v863 = vmax.f32 %v799, 0.0
        %v864 = vmax.f32 %v804, 0.0
        %v865 = vmax.f32 %v807, 0.0
        %v866 = vmax.f32 %v812, 0.0
        %v867 = vmax.f32 %v815, 0.0
        %v868 = vmax.f32 %v820, 0.0
        %v869 = vmax.f32 %v823, 0.0
        %v870 = vmax.f32 %v828, 0.0
        %v871 = vmax.f32 %v831, 0.0
        %v872 = vmax.f32 %v836, 0.0
        %v873 = vmax.f32 %v839, 0.0
        %v874 = vpack.c.bf16 %v843, %v842
        %v875 = vpack.c.bf16 %v845, %v844
        %v876 = vpack.c.bf16 %v847, %v846
        %v877 = vpack.c.bf16 %v849, %v848
        %v878 = vpack.c.bf16 %v851, %v850
        %v879 = vpack.c.bf16 %v853, %v852
        %v880 = vpack.c.bf16 %v855, %v854
        %v881 = vpack.c.bf16 %v857, %v856
        %v882 = vpack.c.bf16 %v859, %v858
        %v883 = vpack.c.bf16 %v861, %v860
        %v884 = vpack.c.bf16 %v863, %v862
        %v885 = vpack.c.bf16 %v865, %v864
        %v886 = vpack.c.bf16 %v867, %v866
        %v887 = vpack.c.bf16 %v869, %v868
        %v888 = vpack.c.bf16 %v871, %v870
        %v889 = vpack.c.bf16 %v873, %v872
        %v890 = vld [vmem:[%s5] sm:$0xf]
        %v891 = vld [vmem:[%s5 + $0x4] sm:$0xf]
        %v892 = vld [vmem:[%s5 + $0x8] sm:$0xf]
        %v893 = vld [vmem:[%s5 + $0xc] sm:$0xf]
        %v894 = vld [vmem:[%s5 + $0x10] sm:$0xf]
        %v895 = vld [vmem:[%s5 + $0x14] sm:$0xf]
        %v896 = vld [vmem:[%s5 + $0x18] sm:$0xf]
        %v897 = vld [vmem:[%s5 + $0x1c] sm:$0xf]
        %v898 = vld [vmem:[%s5 + $0x20] sm:$0xf]
        %v899 = vld [vmem:[%s5 + $0x24] sm:$0xf]
        %v900 = vld [vmem:[%s5 + $0x28] sm:$0xf]
        %v901 = vld [vmem:[%s5 + $0x2c] sm:$0xf]
        %v902 = vld [vmem:[%s5 + $0x30] sm:$0xf]
        %v903 = vld [vmem:[%s5 + $0x34] sm:$0xf]
        %v904 = vld [vmem:[%s5 + $0x38] sm:$0xf]
        %v905 = vld [vmem:[%s5 + $0x3c] sm:$0xf]
        %v906 = vld [vmem:[%s6] sm:$0xff]
        %v907 = vld [vmem:[%s6 + $0x8] sm:$0xff]
        %v908 = vld [vmem:[%s6 + $0x10] sm:$0xff]
        %v909 = vld [vmem:[%s6 + $0x18] sm:$0xff]
        %v910 = vld [vmem:[%s6 + $0x20] sm:$0xff]
        %v911 = vld [vmem:[%s6 + $0x28] sm:$0xff]
        %v912 = vld [vmem:[%s6 + $0x30] sm:$0xff]
        %v913 = vld [vmem:[%s6 + $0x38] sm:$0xff]
        %v914 = vld [vmem:[%s6 + $0x40] sm:$0xff]
        %v915 = vld [vmem:[%s6 + $0x48] sm:$0xff]
        %v916 = vld [vmem:[%s6 + $0x50] sm:$0xff]
        %v917 = vld [vmem:[%s6 + $0x58] sm:$0xff]
        %v918 = vld [vmem:[%s6 + $0x60] sm:$0xff]
        %v919 = vld [vmem:[%s6 + $0x68] sm:$0xff]
        %v920 = vld [vmem:[%s6 + $0x70] sm:$0xff]
        %v921 = vld [vmem:[%s6 + $0x78] sm:$0xff]
        %923 = vset.pattern.permute.xlu0 0
        %924 = vperm.xlu0 %923, %v906
        %v925 = vpop.permute.xlu0 %924
        %928 = vset.pattern.permute.xlu0 0
        %929 = vperm.xlu0 %928, %v907
        %v930 = vpop.permute.xlu0 %929
        %933 = vset.pattern.permute.xlu0 0
        %934 = vperm.xlu0 %933, %v908
        %v935 = vpop.permute.xlu0 %934
        %938 = vset.pattern.permute.xlu0 0
        %939 = vperm.xlu0 %938, %v909
        %v940 = vpop.permute.xlu0 %939
        %943 = vset.pattern.permute.xlu0 0
        %944 = vperm.xlu0 %943, %v910
        %v945 = vpop.permute.xlu0 %944
        %948 = vset.pattern.permute.xlu0 0
        %949 = vperm.xlu0 %948, %v911
        %v950 = vpop.permute.xlu0 %949
        %953 = vset.pattern.permute.xlu0 0
        %954 = vperm.xlu0 %953, %v912
        %v955 = vpop.permute.xlu0 %954
        %958 = vset.pattern.permute.xlu0 0
        %959 = vperm.xlu0 %958, %v913
        %v960 = vpop.permute.xlu0 %959
        %963 = vset.pattern.permute.xlu0 0
        %964 = vperm.xlu0 %963, %v914
        %v965 = vpop.permute.xlu0 %964
        %968 = vset.pattern.permute.xlu0 0
        %969 = vperm.xlu0 %968, %v915
        %v970 = vpop.permute.xlu0 %969
        %973 = vset.pattern.permute.xlu0 0
        %974 = vperm.xlu0 %973, %v916
        %v975 = vpop.permute.xlu0 %974
        %978 = vset.pattern.permute.xlu0 0
        %979 = vperm.xlu0 %978, %v917
        %v980 = vpop.permute.xlu0 %979
        %983 = vset.pattern.permute.xlu0 0
        %984 = vperm.xlu0 %983, %v918
        %v985 = vpop.permute.xlu0 %984
        %988 = vset.pattern.permute.xlu0 0
        %989 = vperm.xlu0 %988, %v919
        %v990 = vpop.permute.xlu0 %989
        %993 = vset.pattern.permute.xlu0 0
        %994 = vperm.xlu0 %993, %v920
        %v995 = vpop.permute.xlu0 %994
        %998 = vset.pattern.permute.xlu0 0
        %999 = vperm.xlu0 %998, %v921
        %v1000 = vpop.permute.xlu0 %999
        %v1018 = vunpack.c.l.b16 %v890
        %v1019 = vunpack.c.l.b16 %v891
        %v1020 = vunpack.c.l.b16 %v892
        %v1021 = vunpack.c.l.b16 %v893
        %v1022 = vunpack.c.l.b16 %v894
        %v1023 = vunpack.c.l.b16 %v895
        %v1024 = vunpack.c.l.b16 %v896
        %v1025 = vunpack.c.l.b16 %v897
        %v1026 = vunpack.c.l.b16 %v898
        %v1027 = vunpack.c.l.b16 %v899
        %v1028 = vunpack.c.l.b16 %v900
        %v1029 = vunpack.c.l.b16 %v901
        %v1030 = vunpack.c.l.b16 %v902
        %v1031 = vunpack.c.l.b16 %v903
        %v1032 = vunpack.c.l.b16 %v904
        %v1033 = vunpack.c.l.b16 %v905
        %v1034 = vpack.c.b16 %v1019, %v1018
        %v1035 = vpack.c.b16 %v1021, %v1020
        %v1036 = vpack.c.b16 %v1023, %v1022
        %v1037 = vpack.c.b16 %v1025, %v1024
        %v1038 = vpack.c.b16 %v1027, %v1026
        %v1039 = vpack.c.b16 %v1029, %v1028
        %v1040 = vpack.c.b16 %v1031, %v1030
        %v1041 = vpack.c.b16 %v1033, %v1032
        %1050 = vmatprep.subr.bf16.mxu0 0
        %1051 = vmatpush1.bf16.xpose.msra.mxu0 %v881
        %1052 = vmatprep.subr.bf16.mxu0 0
        %1053 = vmatpush1.bf16.xpose.msra.mxu0 %v880
        %1054 = vmatprep.subr.bf16.mxu0 0
        %1055 = vmatpush1.bf16.xpose.msra.mxu0 %v879
        %1056 = vmatprep.subr.bf16.mxu0 0
        %1057 = vmatpush1.bf16.xpose.msra.mxu0 %v878
        %1058 = vmatprep.subr.bf16.mxu0 0
        %1059 = vmatpush1.bf16.xpose.msra.mxu0 %v877
        %1060 = vmatprep.subr.bf16.mxu0 0
        %1061 = vmatpush1.bf16.xpose.msra.mxu0 %v876
        %1062 = vmatprep.subr.bf16.mxu0 0
        %1063 = vmatpush1.bf16.xpose.msra.mxu0 %v875
        %1064 = vmatprep.subr.bf16.mxu0 0
        %1065 = vmatpush1.bf16.xpose.msra.mxu0 %v874
        %1066 = vmatprep.subr.bf16.mxu0 0
        %1067 = vmatpush2.bf16.xpose.msra.mxu0 %v889
        %1068 = vmatprep.subr.bf16.mxu0 0
        %1069 = vmatpush2.bf16.xpose.msra.mxu0 %v888
        %1070 = vmatprep.subr.bf16.mxu0 0
        %1071 = vmatpush2.bf16.xpose.msra.mxu0 %v887
        %1072 = vmatprep.subr.bf16.mxu0 0
        %1073 = vmatpush2.bf16.xpose.msra.mxu0 %v886
        %1074 = vmatprep.subr.bf16.mxu0 0
        %1075 = vmatpush2.bf16.xpose.msra.mxu0 %v885
        %1076 = vmatprep.subr.bf16.mxu0 0
        %1077 = vmatpush2.bf16.xpose.msra.mxu0 %v884
        %1078 = vmatprep.subr.bf16.mxu0 0
        %1079 = vmatpush2.bf16.xpose.msra.mxu0 %v883
        %1080 = vmatprep.subr.bf16.mxu0 0
        %1081 = vmatpush2.bf16.xpose.msra.mxu0 %v882
        %1082 = vmatprep.mubr.bf16.mxu0 0
        %1083 = vmatmul.mubr.bf16.gmra.mxu0 %v1034
        %v1084 = vpop.f32.mrf.mxu0
        %v1085 = vadd.f32 %v925, %v1084
        %v1086 = vpop.f32.mrf.mxu0
        %v1087 = vadd.f32 %v925, %v1086
        %v1088 = vpop.f32.mrf.mxu0
        %v1089 = vadd.f32 %v930, %v1088
        %v1090 = vpop.f32.mrf.mxu0
        %v1091 = vadd.f32 %v930, %v1090
        %1092 = vmatprep.mubr.bf16.mxu0 0
        %1093 = vmatmul.mubr.bf16.gmra.mxu0 %v1035
        %v1094 = vpop.f32.mrf.mxu0
        %v1095 = vadd.f32 %v935, %v1094
        %v1096 = vpop.f32.mrf.mxu0
        %v1097 = vadd.f32 %v935, %v1096
        %v1098 = vpop.f32.mrf.mxu0
        %v1099 = vadd.f32 %v940, %v1098
        %v1100 = vpop.f32.mrf.mxu0
        %v1101 = vadd.f32 %v940, %v1100
        %1102 = vmatprep.mubr.bf16.mxu0 0
        %1103 = vmatmul.mubr.bf16.gmra.mxu0 %v1036
        %v1104 = vpop.f32.mrf.mxu0
        %v1105 = vadd.f32 %v945, %v1104
        %v1106 = vpop.f32.mrf.mxu0
        %v1107 = vadd.f32 %v945, %v1106
        %v1108 = vpop.f32.mrf.mxu0
        %v1109 = vadd.f32 %v950, %v1108
        %v1110 = vpop.f32.mrf.mxu0
        %v1111 = vadd.f32 %v950, %v1110
        %1112 = vmatprep.mubr.bf16.mxu0 0
        %1113 = vmatmul.mubr.bf16.gmra.mxu0 %v1037
        %v1114 = vpop.f32.mrf.mxu0
        %v1115 = vadd.f32 %v955, %v1114
        %v1116 = vpop.f32.mrf.mxu0
        %v1117 = vadd.f32 %v955, %v1116
        %v1118 = vpop.f32.mrf.mxu0
        %v1119 = vadd.f32 %v960, %v1118
        %v1120 = vpop.f32.mrf.mxu0
        %v1121 = vadd.f32 %v960, %v1120
        %1122 = vmatprep.mubr.bf16.mxu0 0
        %1123 = vmatmul.mubr.bf16.gmra.mxu0 %v1038
        %v1124 = vpop.f32.mrf.mxu0
        %v1125 = vadd.f32 %v965, %v1124
        %v1126 = vpop.f32.mrf.mxu0
        %v1127 = vadd.f32 %v965, %v1126
        %v1128 = vpop.f32.mrf.mxu0
        %v1129 = vadd.f32 %v970, %v1128
        %v1130 = vpop.f32.mrf.mxu0
        %v1131 = vadd.f32 %v970, %v1130
        %1132 = vmatprep.mubr.bf16.mxu0 0
        %1133 = vmatmul.mubr.bf16.gmra.mxu0 %v1039
        %v1134 = vpop.f32.mrf.mxu0
        %v1135 = vadd.f32 %v975, %v1134
        %v1136 = vpop.f32.mrf.mxu0
        %v1137 = vadd.f32 %v975, %v1136
        %v1138 = vpop.f32.mrf.mxu0
        %v1139 = vadd.f32 %v980, %v1138
        %v1140 = vpop.f32.mrf.mxu0
        %v1141 = vadd.f32 %v980, %v1140
        %1142 = vmatprep.mubr.bf16.mxu0 0
        %1143 = vmatmul.mubr.bf16.gmra.mxu0 %v1040
        %v1144 = vpop.f32.mrf.mxu0
        %v1145 = vadd.f32 %v985, %v1144
        %v1146 = vpop.f32.mrf.mxu0
        %v1147 = vadd.f32 %v985, %v1146
        %v1148 = vpop.f32.mrf.mxu0
        %v1149 = vadd.f32 %v990, %v1148
        %v1150 = vpop.f32.mrf.mxu0
        %v1151 = vadd.f32 %v990, %v1150
        %1152 = vmatprep.mubr.bf16.mxu0 0
        %1153 = vmatmul.mubr.bf16.gmra.mxu0 %v1041
        %v1154 = vpop.f32.mrf.mxu0
        %v1155 = vadd.f32 %v995, %v1154
        %v1156 = vpop.f32.mrf.mxu0
        %v1157 = vadd.f32 %v995, %v1156
        %v1158 = vpop.f32.mrf.mxu0
        %v1159 = vadd.f32 %v1000, %v1158
        %v1160 = vpop.f32.mrf.mxu0
        %v1161 = vadd.f32 %v1000, %v1160
        %1162 = vdwg.mxu0
        %v1163 = vmax.f32 %v1085, %v1095
        %v1164 = vmax.f32 %v1089, %v1099
        %v1165 = vmax.f32 %v1163, %v1105
        %v1166 = vmax.f32 %v1164, %v1109
        %v1167 = vmax.f32 %v1165, %v1115
        %v1168 = vmax.f32 %v1166, %v1119
        %v1169 = vmax.f32 %v1167, %v1125
        %v1170 = vmax.f32 %v1168, %v1129
        %v1171 = vmax.f32 %v1169, %v1135
        %v1172 = vmax.f32 %v1170, %v1139
        %v1173 = vmax.f32 %v1171, %v1145
        %v1174 = vmax.f32 %v1172, %v1149
        %v1175 = vmax.f32 %v1173, %v1155
        %v1176 = vmax.f32 %v1174, %v1159
        %v1177 = vmax.f32 %v1175, %v1176
        %v1178 = vrot.slane %v1177, 4
        %v1179 = vmax.f32 %v1177, %v1178
        %v1180 = vrot.slane %v1179, 2
        %v1181 = vmax.f32 %v1179, %v1180
        %v1182 = vrot.slane %v1181, 1
        %v1183 = vmax.f32 %v1181, %v1182
        %v1184 = vmax.f32 %v1087, %v1097
        %v1185 = vmax.f32 %v1091, %v1101
        %v1186 = vmax.f32 %v1184, %v1107
        %v1187 = vmax.f32 %v1185, %v1111
        %v1188 = vmax.f32 %v1186, %v1117
        %v1189 = vmax.f32 %v1187, %v1121
        %v1190 = vmax.f32 %v1188, %v1127
        %v1191 = vmax.f32 %v1189, %v1131
        %v1192 = vmax.f32 %v1190, %v1137
        %v1193 = vmax.f32 %v1191, %v1141
        %v1194 = vmax.f32 %v1192, %v1147
        %v1195 = vmax.f32 %v1193, %v1151
        %v1196 = vmax.f32 %v1194, %v1157
        %v1197 = vmax.f32 %v1195, %v1161
        %v1198 = vmax.f32 %v1196, %v1197
        %v1199 = vrot.slane %v1198, 4
        %v1200 = vmax.f32 %v1198, %v1199
        %v1201 = vrot.slane %v1200, 2
        %v1202 = vmax.f32 %v1200, %v1201
        %v1203 = vrot.slane %v1202, 1
        %v1204 = vmax.f32 %v1202, %v1203
        %v1205 = vlaneseq
        %v1206 = vshrl.u32 %v1205, 7
        %v1207 = vadd.s32 %v1206, 8
        %v1208 = vadd.s32 %v1206, 16
        %v1209 = vadd.s32 %v1206, 24
        %v1210 = vadd.s32 %v1206, 32
        %v1211 = vadd.s32 %v1206, 40
        %v1212 = vadd.s32 %v1206, 48
        %v1213 = vadd.s32 %v1206, 56
        %v1214 = vadd.s32 %v1206, 64
        %v1215 = vadd.s32 %v1206, 72
        %v1216 = vadd.s32 %v1206, 80
        %v1217 = vadd.s32 %v1206, 88
        %v1218 = vadd.s32 %v1206, 96
        %v1219 = vadd.s32 %v1206, 104
        %v1220 = vadd.s32 %v1206, 112
        %v1221 = vadd.s32 %v1206, 120
        %vm1222 = vcmp.eq.f32.partialorder %v1085, %v1183
        %vm1223 = vcmp.eq.f32.partialorder %v1087, %v1204
        %vm1224 = vcmp.eq.f32.partialorder %v1089, %v1183
        %vm1225 = vcmp.eq.f32.partialorder %v1091, %v1204
        %vm1226 = vcmp.eq.f32.partialorder %v1095, %v1183
        %vm1227 = vcmp.eq.f32.partialorder %v1097, %v1204
        %vm1228 = vcmp.eq.f32.partialorder %v1099, %v1183
        %vm1229 = vcmp.eq.f32.partialorder %v1101, %v1204
        %vm1230 = vcmp.eq.f32.partialorder %v1105, %v1183
        %vm1231 = vcmp.eq.f32.partialorder %v1107, %v1204
        %vm1232 = vcmp.eq.f32.partialorder %v1109, %v1183
        %vm1233 = vcmp.eq.f32.partialorder %v1111, %v1204
        %vm1234 = vcmp.eq.f32.partialorder %v1115, %v1183
        %vm1235 = vcmp.eq.f32.partialorder %v1117, %v1204
        %vm1236 = vcmp.eq.f32.partialorder %v1119, %v1183
        %vm1237 = vcmp.eq.f32.partialorder %v1121, %v1204
        %vm1238 = vcmp.eq.f32.partialorder %v1125, %v1183
        %vm1239 = vcmp.eq.f32.partialorder %v1127, %v1204
        %vm1240 = vcmp.eq.f32.partialorder %v1129, %v1183
        %vm1241 = vcmp.eq.f32.partialorder %v1131, %v1204
        %vm1242 = vcmp.eq.f32.partialorder %v1135, %v1183
        %vm1243 = vcmp.eq.f32.partialorder %v1137, %v1204
        %vm1244 = vcmp.eq.f32.partialorder %v1139, %v1183
        %vm1245 = vcmp.eq.f32.partialorder %v1141, %v1204
        %vm1246 = vcmp.eq.f32.partialorder %v1145, %v1183
        %vm1247 = vcmp.eq.f32.partialorder %v1147, %v1204
        %vm1248 = vcmp.eq.f32.partialorder %v1149, %v1183
        %vm1249 = vcmp.eq.f32.partialorder %v1151, %v1204
        %vm1250 = vcmp.eq.f32.partialorder %v1155, %v1183
        %vm1251 = vcmp.eq.f32.partialorder %v1157, %v1204
        %vm1252 = vcmp.eq.f32.partialorder %v1159, %v1183
        %vm1253 = vcmp.eq.f32.partialorder %v1161, %v1204
        %v1254 = vsel %vm1222, %v1206, 2147483647
        %v1255 = vsel %vm1223, %v1206, 2147483647
        %v1256 = vsel %vm1224, %v1207, 2147483647
        %v1257 = vsel %vm1225, %v1207, 2147483647
        %v1258 = vsel %vm1226, %v1208, 2147483647
        %v1259 = vsel %vm1227, %v1208, 2147483647
        %v1260 = vsel %vm1228, %v1209, 2147483647
        %v1261 = vsel %vm1229, %v1209, 2147483647
        %v1262 = vsel %vm1230, %v1210, 2147483647
        %v1263 = vsel %vm1231, %v1210, 2147483647
        %v1264 = vsel %vm1232, %v1211, 2147483647
        %v1265 = vsel %vm1233, %v1211, 2147483647
        %v1266 = vsel %vm1234, %v1212, 2147483647
        %v1267 = vsel %vm1235, %v1212, 2147483647
        %v1268 = vsel %vm1236, %v1213, 2147483647
        %v1269 = vsel %vm1237, %v1213, 2147483647
        %v1270 = vsel %vm1238, %v1214, 2147483647
        %v1271 = vsel %vm1239, %v1214, 2147483647
        %v1272 = vsel %vm1240, %v1215, 2147483647
        %v1273 = vsel %vm1241, %v1215, 2147483647
        %v1274 = vsel %vm1242, %v1216, 2147483647
        %v1275 = vsel %vm1243, %v1216, 2147483647
        %v1276 = vsel %vm1244, %v1217, 2147483647
        %v1277 = vsel %vm1245, %v1217, 2147483647
        %v1278 = vsel %vm1246, %v1218, 2147483647
        %v1279 = vsel %vm1247, %v1218, 2147483647
        %v1280 = vsel %vm1248, %v1219, 2147483647
        %v1281 = vsel %vm1249, %v1219, 2147483647
        %v1282 = vsel %vm1250, %v1220, 2147483647
        %v1283 = vsel %vm1251, %v1220, 2147483647
        %v1284 = vsel %vm1252, %v1221, 2147483647
        %v1285 = vsel %vm1253, %v1221, 2147483647
        %vm1286 = vcmp.lt.s32.totalorder %v1254, %v1258
        %v1287 = vsel %vm1286, %v1254, %v1258
        %vm1288 = vcmp.lt.s32.totalorder %v1256, %v1260
        %v1289 = vsel %vm1288, %v1256, %v1260
        %vm1290 = vcmp.lt.s32.totalorder %v1287, %v1262
        %v1291 = vsel %vm1290, %v1287, %v1262
        %vm1292 = vcmp.lt.s32.totalorder %v1289, %v1264
        %v1293 = vsel %vm1292, %v1289, %v1264
        %vm1294 = vcmp.lt.s32.totalorder %v1291, %v1266
        %v1295 = vsel %vm1294, %v1291, %v1266
        %vm1296 = vcmp.lt.s32.totalorder %v1293, %v1268
        %v1297 = vsel %vm1296, %v1293, %v1268
        %vm1298 = vcmp.lt.s32.totalorder %v1295, %v1270
        %v1299 = vsel %vm1298, %v1295, %v1270
        %vm1300 = vcmp.lt.s32.totalorder %v1297, %v1272
        %v1301 = vsel %vm1300, %v1297, %v1272
        %vm1302 = vcmp.lt.s32.totalorder %v1299, %v1274
        %v1303 = vsel %vm1302, %v1299, %v1274
        %vm1304 = vcmp.lt.s32.totalorder %v1301, %v1276
        %v1305 = vsel %vm1304, %v1301, %v1276
        %vm1306 = vcmp.lt.s32.totalorder %v1303, %v1278
        %v1307 = vsel %vm1306, %v1303, %v1278
        %vm1308 = vcmp.lt.s32.totalorder %v1305, %v1280
        %v1309 = vsel %vm1308, %v1305, %v1280
        %vm1310 = vcmp.lt.s32.totalorder %v1307, %v1282
        %v1311 = vsel %vm1310, %v1307, %v1282
        %vm1312 = vcmp.lt.s32.totalorder %v1309, %v1284
        %v1313 = vsel %vm1312, %v1309, %v1284
        %vm1314 = vcmp.lt.s32.totalorder %v1311, %v1313
        %v1315 = vsel %vm1314, %v1311, %v1313
        %v1316 = vrot.slane %v1315, 4
        %vm1317 = vcmp.lt.s32.totalorder %v1315, %v1316
        %v1318 = vsel %vm1317, %v1315, %v1316
        %v1319 = vrot.slane %v1318, 2
        %vm1320 = vcmp.lt.s32.totalorder %v1318, %v1319
        %v1321 = vsel %vm1320, %v1318, %v1319
        %v1322 = vrot.slane %v1321, 1
        %vm1323 = vcmp.lt.s32.totalorder %v1321, %v1322
        %v1324 = vsel %vm1323, %v1321, %v1322
        %vm1325 = vcmp.lt.s32.totalorder %v1255, %v1259
        %v1326 = vsel %vm1325, %v1255, %v1259
        %vm1327 = vcmp.lt.s32.totalorder %v1257, %v1261
        %v1328 = vsel %vm1327, %v1257, %v1261
        %vm1329 = vcmp.lt.s32.totalorder %v1326, %v1263
        %v1330 = vsel %vm1329, %v1326, %v1263
        %vm1331 = vcmp.lt.s32.totalorder %v1328, %v1265
        %v1332 = vsel %vm1331, %v1328, %v1265
        %vm1333 = vcmp.lt.s32.totalorder %v1330, %v1267
        %v1334 = vsel %vm1333, %v1330, %v1267
        %vm1335 = vcmp.lt.s32.totalorder %v1332, %v1269
        %v1336 = vsel %vm1335, %v1332, %v1269
        %vm1337 = vcmp.lt.s32.totalorder %v1334, %v1271
        %v1338 = vsel %vm1337, %v1334, %v1271
        %vm1339 = vcmp.lt.s32.totalorder %v1336, %v1273
        %v1340 = vsel %vm1339, %v1336, %v1273
        %vm1341 = vcmp.lt.s32.totalorder %v1338, %v1275
        %v1342 = vsel %vm1341, %v1338, %v1275
        %vm1343 = vcmp.lt.s32.totalorder %v1340, %v1277
        %v1344 = vsel %vm1343, %v1340, %v1277
        %vm1345 = vcmp.lt.s32.totalorder %v1342, %v1279
        %v1346 = vsel %vm1345, %v1342, %v1279
        %vm1347 = vcmp.lt.s32.totalorder %v1344, %v1281
        %v1348 = vsel %vm1347, %v1344, %v1281
        %vm1349 = vcmp.lt.s32.totalorder %v1346, %v1283
        %v1350 = vsel %vm1349, %v1346, %v1283
        %vm1351 = vcmp.lt.s32.totalorder %v1348, %v1285
        %v1352 = vsel %vm1351, %v1348, %v1285
        %vm1353 = vcmp.lt.s32.totalorder %v1350, %v1352
        %v1354 = vsel %vm1353, %v1350, %v1352
        %v1355 = vrot.slane %v1354, 4
        %vm1356 = vcmp.lt.s32.totalorder %v1354, %v1355
        %v1357 = vsel %vm1356, %v1354, %v1355
        %v1358 = vrot.slane %v1357, 2
        %vm1359 = vcmp.lt.s32.totalorder %v1357, %v1358
        %v1360 = vsel %vm1359, %v1357, %v1358
        %v1361 = vrot.slane %v1360, 1
        %vm1362 = vcmp.lt.s32.totalorder %v1360, %v1361
        %v1363 = vsel %vm1362, %v1360, %v1361
        %v1364 = vcombine.low %v1324, %v1363
        %v1366 = vunpack.c.l.s4 1966171168
        %v1367 = vunpack.c.0.s8 %v1366
        %v1368 = vlaneseq
        %v1369 = vshrl.u32 %v1368, 7
        %v1370 = vsub.s32 %v1367, %v1369
        %v1371 = vrot.slane %v1364, %v1370
        %v1373 = vunpack.c.l.s4 1966171168
        %v1374 = vunpack.c.0.s8 %v1373
        %v1375 = vlaneseq
        %v1376 = vshrl.u32 %v1375, 7
        %v1377 = vsub.s32 %v1374, %v1376
        %v1378 = vrot.slane %v1371, %v1377
        %v1379 = vlaneseq
        %vm1380 = vcmp.ge.s32.totalorder %v1379, 0
        %vm1381 = vcmp.lt.s32.totalorder %v1379, 256
        %vm1382 = vmand %vm1380, %vm1381
        %1383 = vst.msk [vmem:[%s272] sm:$0x3] %vm1382, %v1378
        %s1384 = sand.u32 %s181, 1
        %s1385 = scalar_lea.sflag [#allocation3], %s1384
        %s1386 = sand.u32 %s181, 1
        %s1387 = smul.addr %s1386, 2
        %s1388 = scalar_lea.vmem [#allocation2], %s1387
        // Predicated region
        $region49: #{tpu_custom_call.1} parent=47 // pred_check
          %p1389 = pneg %p191
        $region50: #{tpu_custom_call.1} parent=47 // pred_check_branch
          %1391 = sbr.rel (%p1389) target = $region52
        $region51: #{tpu_custom_call.1} parent=47 // pred_region
          %s1392 = smul.u32 2, %s21
          %s1394 = ssub.s32 32, 32
          %1395 = vsyncadd %s1385, %s1394
          %s1396 = smul.addr %s1392, 16
          %s1397 = scalar_lea.hbm %s7, %s1396
          %s1399 = sshll.u32 %s1388, 4
          %s1400 = int_to_ptr.vmem [resolvable:$true] %s1399
          %1402 = dma.vmem_to_hbm [thread:$0]  %s1400, 32, %s1397, %s1385
        $region52: #{tpu_custom_call.1} parent=47 // pred_fallthru
          _
      $region48: #{tpu_custom_call.1} parent=5 // pred_fallthru
        _
      %p1403 = scmp.le.s32.totalorder 2, %s16
      // Predicated region
      $region53: #{tpu_custom_call.1} parent=5 // pred_check
        %p1404 = pneg %p1403
      $region54: #{tpu_custom_call.1} parent=5 // pred_check_branch
        %1406 = sbr.rel (%p1404) target = $region56
      $region55: #{tpu_custom_call.1} parent=5 // pred_region
        %s1407 = ssub.s32 %s16, 2
        // Predicated region
        $region57: #{tpu_custom_call.1} parent=55 // pred_check
          %p1408 = pneg %p197
        $region58: #{tpu_custom_call.1} parent=55 // pred_check_branch
          %1410 = sbr.rel (%p1408) target = $region60
        $region59: #{tpu_custom_call.1} parent=55 // pred_region
          %s1411 = sand.u32 %s182, 1
          %s1412 = scalar_lea.sflag [#allocation3], %s1411
          %s1413 = sand.u32 %s182, 1
          %s1414 = smul.addr %s1413, 2
          %s1415 = scalar_lea.vmem [#allocation2], %s1414
          %1416 = dma.done %s1412, 32
        $region60: #{tpu_custom_call.1} parent=55 // pred_fallthru
          _
      $region56: #{tpu_custom_call.1} parent=5 // pred_fallthru
        _
    $region6: #{tpu_custom_call.1} parent=1 // loop_footer
      %s20 = sadd.s32 1, %s16
    $region7: #{tpu_custom_call.1} parent=1 // loop_footer_branch
      %15 = sbr.rel target = $region3
    $region8: #{tpu_custom_call.1} parent=1 // loop_exit
      _
    %1417 = vsyncpa [#allocation3], 1
    %s1418 = scalar_lea.sflag [#allocation3], 1
    %1419 = vsyncpa %s1418, 1

</llo_original>
